<compile_context>
chip_gen: v7x
topology: tpu7x:2x2x1
jax: 0.10.0
libtpu: 0.0.40
codegen_flags: <defaults>
</compile_context>

<pallas_src>
import functools
import math

import jax
import jax.numpy as jnp
from jax.experimental import pallas as pl
from jax.experimental.pallas import tpu as pltpu


def _round_up(x, m):
    return (x + m - 1) // m * m


def angle_predictor_kernel(feat_ref, w_ref, b_ref, cosb_ref, sinb_ref, seg_ref,
                           out_ref, *, num_sets, num_classes,
                           shift_cos_sum, shift_sin_sum):
    """Fused: lane-dense Linear -> per-head softmax (ObjectOrientLayer) ->
    softmax again (MeanShiftLayer) -> circular-mean reductions."""
    x = feat_ref[...]                                       # (TB, D)  f32
    w = w_ref[...]                                          # (D, L)   f32, zero-padded lanes
    seg = seg_ref[...]                                      # (L, L)   block-diag segment-sum

    # One fused matmul for all S heads (lanes [s*C, (s+1)*C) hold head s).
    raw = jnp.dot(x, w, preferred_element_type=jnp.float32) + b_ref[...]   # (TB, L)
    tb, lanes = raw.shape
    num_valid = num_sets * num_classes
    lane = jax.lax.broadcasted_iota(jnp.int32, (tb, lanes), 1)

    # Per-head max (softmax #1 stability) via iota masks, broadcast back to lanes.
    neg_big = jnp.float32(-3.0e38)
    max_b = jnp.zeros_like(raw)                             # pad lanes keep 0 (== raw at pads)
    for s in range(num_sets):                               # static unroll, S heads
        lo = s * num_classes
        mask = (lane >= lo) & (lane < lo + num_classes)
        hmax = jnp.max(jnp.where(mask, raw, neg_big), axis=-1, keepdims=True)
        max_b = jnp.where(mask, hmax, max_b)

    # Softmax #1 (ObjectOrientLayer) -- these probabilities are the returned "logits".
    e1 = jnp.exp(raw - max_b)
    sum1 = jnp.dot(e1, seg, preferred_element_type=jnp.float32)   # per-head sums, lane-bcast
    p1 = e1 * pl.reciprocal(sum1, approx=True)

    # Softmax #2 (MeanShiftLayer re-applies softmax to the probabilities, as in PyTorch).
    # p1 in (0, 1], so the max subtraction is safely skipped.
    e2 = jnp.exp(p1)
    sum2 = jnp.dot(e2, seg, preferred_element_type=jnp.float32)
    p2 = e2 * pl.reciprocal(sum2, approx=True)

    # Per-head resultant vector (weighted circular mean), broadcast back to lanes.
    rx = jnp.dot(p2 * cosb_ref[...], seg, preferred_element_type=jnp.float32)
    ry = jnp.dot(p2 * sinb_ref[...], seg, preferred_element_type=jnp.float32)

    # theta = atan2(ry, rx); only sums of cos/sin(theta - shift_j) are needed, so the S shift
    # angles fold into two compile-time constants via exact trig identities.
    inv_r = jax.lax.rsqrt(jnp.maximum(rx * rx + ry * ry, jnp.float32(1e-20)))  # guards r == 0
    cos_t = rx * inv_r
    sin_t = ry * inv_r
    sx = cos_t * shift_cos_sum + sin_t * shift_sin_sum
    sy = sin_t * shift_cos_sum - cos_t * shift_sin_sum

    # Each head's value is replicated C times along lanes; pad lanes contribute 0.
    scale = jnp.float32(1.0 / (num_classes * num_sets * num_sets))
    avg_x = jnp.sum(sx, axis=-1, keepdims=True) * scale     # (TB, 1)
    avg_y = jnp.sum(sy, axis=-1, keepdims=True) * scale     # (TB, 1)

    # Single lane-dense output slab: lanes [0, S*C) = probabilities,
    # lane S*C = avg_x, lane S*C+1 = avg_y.
    out = jnp.where(lane == num_valid, avg_x, p1)
    out = jnp.where(lane == num_valid + 1, avg_y, out)
    out_ref[...] = out


def angle_predictor(features, fc_w, fc_b, *, num_classes, num_sets, batch_tile=256):
    """features: (B, D) pooled backbone features (f32).
    fc_w: (S*C, D) PyTorch nn.Linear weight (row index s*C + c).
    fc_b: (S*C,)   PyTorch nn.Linear bias.
    Returns (probabilities (B, S, C), angles (B,) degrees in [0, 360))."""
    B, D = features.shape
    S, C = num_sets, num_classes
    SC = S * C
    lanes = _round_up(SC + 2, 128)          # lane-dense width; +2 lanes carry avg_x / avg_y

    # --- host-side packing to lane-dense layouts ---
    w_packed = jnp.zeros((D, lanes), jnp.float32).at[:, :SC].set(
        jnp.asarray(fc_w, jnp.float32).T)
    b_packed = jnp.zeros((1, lanes), jnp.float32).at[:, :SC].set(
        jnp.asarray(fc_b, jnp.float32)[None, :])

    # MeanShiftLayer base-angle tables (deterministic, parameter-free), packed lane-dense.
    unit_shift = 360.0 / C / S
    base = (jnp.arange(0, 360, 360.0 / C, dtype=jnp.float32)[None, :]
            + jnp.arange(S, dtype=jnp.float32)[:, None] * unit_shift) % 360.0     # (S, C)
    rad = jnp.deg2rad(base).reshape(1, SC)
    cosb = jnp.zeros((1, lanes), jnp.float32).at[:, :SC].set(jnp.cos(rad))
    sinb = jnp.zeros((1, lanes), jnp.float32).at[:, :SC].set(jnp.sin(rad))

    # Block-diagonal segment-sum matrix: sums within each head's C lanes and broadcasts the
    # result back to those lanes; identity on pad lanes keeps pads finite and benign.
    lane_idx = jnp.arange(lanes)
    head_of = lane_idx // C
    valid = lane_idx < SC
    same_head = (head_of[:, None] == head_of[None, :]) & valid[:, None] & valid[None, :]
    pad_eye = (~valid[:, None]) & (lane_idx[:, None] == lane_idx[None, :])
    segmat = (same_head | pad_eye).astype(jnp.float32)

    # Compile-time constants: sums over the S shift angles.
    shifts = [math.radians(j * unit_shift) for j in range(S)]
    shift_cos_sum = float(sum(math.cos(t) for t in shifts))
    shift_sin_sum = float(sum(math.sin(t) for t in shifts))

    # --- batch tiling (grid over batch; weight/tables resident across the grid) ---
    tb = batch_tile if B >= batch_tile else _round_up(B, 8)
    b_pad = _round_up(B, tb)
    feats = jnp.asarray(features, jnp.float32)
    if b_pad != B:
        feats = jnp.pad(feats, ((0, b_pad - B), (0, 0)))

    kernel = functools.partial(
        angle_predictor_kernel,
        num_sets=S, num_classes=C,
        shift_cos_sum=shift_cos_sum, shift_sin_sum=shift_sin_sum)

    const = lambda i: (0, 0)
    out = pl.pallas_call(
        kernel,
        grid=(b_pad // tb,),
        in_specs=[
            pl.BlockSpec((tb, D), lambda i: (i, 0)),        # features tile
            pl.BlockSpec((D, lanes), const),                # packed FC weight (resident)
            pl.BlockSpec((1, lanes), const),                # packed bias
            pl.BlockSpec((1, lanes), const),                # cos table
            pl.BlockSpec((1, lanes), const),                # sin table
            pl.BlockSpec((lanes, lanes), const),            # segment-sum matrix
        ],
        out_specs=pl.BlockSpec((tb, lanes), lambda i: (i, 0)),
        out_shape=jax.ShapeDtypeStruct((b_pad, lanes), jnp.float32),
        compiler_params=pltpu.CompilerParams(
            dimension_semantics=("parallel",),
            vmem_limit_bytes=32 * 1024 * 1024),
    )(feats, w_packed, b_packed, cosb, sinb, segmat)

    out = out[:B]
    logits = out[:, :SC].reshape(B, S, C)                   # PyTorch (B, S, C) layout (free)
    avg_x = out[:, SC]
    avg_y = out[:, SC + 1]
    # Tiny epilogue (atan2 of B scalar pairs) kept in plain-JAX glue — not the hot path.
    ang = jnp.degrees(jnp.arctan2(avg_y, avg_x)) % 360.0
    angles = ang % 360.0                                    # reference applies % 360 twice
    return logits, angles


if __name__ == "__main__":
    B, D, C, S = 2, 256, 8, 9   # small stand-ins for (batch, input_dim=2048, num_classes, num_heads)
    key = jax.random.PRNGKey(0)
    k1, k2, k3 = jax.random.split(key, 3)
    features = jax.random.normal(k1, (B, D), dtype=jnp.float32)
    fc_w = jax.random.normal(k2, (S * C, D), dtype=jnp.float32) * 0.05   # nn.Linear weight (S*C, D)
    fc_b = jax.random.normal(k3, (S * C,), dtype=jnp.float32) * 0.05     # nn.Linear bias   (S*C,)

    logits, angles = angle_predictor(features, fc_w, fc_b, num_classes=C, num_sets=S)
    jax.block_until_ready((logits, angles))

    assert logits.shape == (B, S, C) and angles.shape == (B,)
    assert bool(jnp.all(jnp.isfinite(logits))) and bool(jnp.all(jnp.isfinite(angles)))
    # probabilities from ObjectOrientLayer softmax should sum to ~1 per (b, s)
    # (loose tolerance: MXU segment sums + EUP approx reciprocal)
    assert bool(jnp.allclose(jnp.sum(logits, axis=-1), 1.0, atol=1e-2))
    assert bool(jnp.all((angles >= 0.0) & (angles <= 360.0)))
    print("KERNEL_OK")
</pallas_src>

<mosaic_0001>
module attributes {stable_mosaic.version = 11 : i64} {
  func.func @angle_predictor_kernel(%arg0: i32, %arg1: memref<8x256xf32, #tpu.memory_space<vmem>>, %arg2: memref<256x128xf32, #tpu.memory_space<vmem>>, %arg3: memref<1x128xf32, #tpu.memory_space<vmem>>, %arg4: memref<1x128xf32, #tpu.memory_space<vmem>>, %arg5: memref<1x128xf32, #tpu.memory_space<vmem>>, %arg6: memref<128x128xf32, #tpu.memory_space<vmem>>, %arg7: memref<8x128xf32, #tpu.memory_space<vmem>>) attributes {dimension_semantics = [#tpu.dimension_semantics<parallel>], iteration_bounds = array<i64: 1>, scalar_prefetch = 0 : i64, scratch_operands = 0 : i64, tpu.core_type = #tpu.core_type<tc>, window_params = [{transform_indices = @transform_0, window_bounds = array<i64: 8, 256>}, {pipeline_mode = #tpu.pipeline_mode<synchronous>, transform_indices = @transform_1, window_bounds = array<i64: 256, 128>}, {pipeline_mode = #tpu.pipeline_mode<synchronous>, transform_indices = @transform_2, window_bounds = array<i64: 1, 128>}, {pipeline_mode = #tpu.pipeline_mode<synchronous>, transform_indices = @transform_3, window_bounds = array<i64: 1, 128>}, {pipeline_mode = #tpu.pipeline_mode<synchronous>, transform_indices = @transform_4, window_bounds = array<i64: 1, 128>}, {pipeline_mode = #tpu.pipeline_mode<synchronous>, transform_indices = @transform_5, window_bounds = array<i64: 128, 128>}, {transform_indices = @transform_6, window_bounds = array<i64: 8, 128>}]} {
    %c0 = arith.constant 0 : index
    %c0_0 = arith.constant 0 : index
    %0 = vector.load %arg1[%c0, %c0_0] : memref<8x256xf32, #tpu.memory_space<vmem>>, vector<8x256xf32>
    %c0_1 = arith.constant 0 : index
    %c0_2 = arith.constant 0 : index
    %1 = vector.load %arg2[%c0_1, %c0_2] : memref<256x128xf32, #tpu.memory_space<vmem>>, vector<256x128xf32>
    %c0_3 = arith.constant 0 : index
    %c0_4 = arith.constant 0 : index
    %2 = vector.load %arg6[%c0_3, %c0_4] : memref<128x128xf32, #tpu.memory_space<vmem>>, vector<128x128xf32>
    %cst = arith.constant dense<0.000000e+00> : vector<8x128xf32>
    %3 = tpu.matmul %0, %1, %cst {dimension_numbers = #tpu.dot_dimension_numbers<[1], [0], [0], [1], [0, 0, 1, 1], [], []>} : vector<8x256xf32>, vector<256x128xf32>, vector<8x128xf32> -> vector<8x128xf32>
    %c0_5 = arith.constant 0 : index
    %c0_6 = arith.constant 0 : index
    %4 = vector.load %arg3[%c0_5, %c0_6] : memref<1x128xf32, #tpu.memory_space<vmem>>, vector<1x128xf32>
    %5 = vector.broadcast %4 : vector<1x128xf32> to vector<8x128xf32>
    %6 = arith.addf %3, %5 : vector<8x128xf32>
    %7 = tpu.iota {dimensions = array<i32: 1>} : vector<8x128xi32>
    %cst_7 = arith.constant 0.000000e+00 : f32
    %8 = vector.broadcast %cst_7 : f32 to vector<8x128xf32>
    %c0_i32 = arith.constant 0 : i32
    %9 = vector.broadcast %c0_i32 : i32 to vector<8x128xi32>
    %10 = arith.cmpi sge, %7, %9 : vector<8x128xi32>
    %c8_i32 = arith.constant 8 : i32
    %11 = vector.broadcast %c8_i32 : i32 to vector<8x128xi32>
    %12 = arith.cmpi slt, %7, %11 : vector<8x128xi32>
    %13 = arith.andi %10, %12 : vector<8x128xi1>
    %cst_8 = arith.constant -3.000000e+38 : f32
    %14 = vector.broadcast %cst_8 : f32 to vector<8x128xf32>
    %15 = arith.select %13, %6, %14 : vector<8x128xi1>, vector<8x128xf32>
    %cst_9 = arith.constant dense<0xFF800000> : vector<8xf32>
    %16 = vector.multi_reduction <maximumf>, %15, %cst_9 [1] : vector<8x128xf32> to vector<8xf32>
    %17 = vector.shape_cast %16 : vector<8xf32> to vector<8x1xf32>
    %18 = vector.shape_cast %17 : vector<8x1xf32> to vector<8x1xf32>
    %19 = vector.broadcast %18 : vector<8x1xf32> to vector<8x128xf32>
    %20 = arith.select %13, %19, %8 : vector<8x128xi1>, vector<8x128xf32>
    %c8_i32_10 = arith.constant 8 : i32
    %21 = vector.broadcast %c8_i32_10 : i32 to vector<8x128xi32>
    %22 = arith.cmpi sge, %7, %21 : vector<8x128xi32>
    %c16_i32 = arith.constant 16 : i32
    %23 = vector.broadcast %c16_i32 : i32 to vector<8x128xi32>
    %24 = arith.cmpi slt, %7, %23 : vector<8x128xi32>
    %25 = arith.andi %22, %24 : vector<8x128xi1>
    %cst_11 = arith.constant -3.000000e+38 : f32
    %26 = vector.broadcast %cst_11 : f32 to vector<8x128xf32>
    %27 = arith.select %25, %6, %26 : vector<8x128xi1>, vector<8x128xf32>
    %cst_12 = arith.constant dense<0xFF800000> : vector<8xf32>
    %28 = vector.multi_reduction <maximumf>, %27, %cst_12 [1] : vector<8x128xf32> to vector<8xf32>
    %29 = vector.shape_cast %28 : vector<8xf32> to vector<8x1xf32>
    %30 = vector.shape_cast %29 : vector<8x1xf32> to vector<8x1xf32>
    %31 = vector.broadcast %30 : vector<8x1xf32> to vector<8x128xf32>
    %32 = arith.select %25, %31, %20 : vector<8x128xi1>, vector<8x128xf32>
    %c16_i32_13 = arith.constant 16 : i32
    %33 = vector.broadcast %c16_i32_13 : i32 to vector<8x128xi32>
    %34 = arith.cmpi sge, %7, %33 : vector<8x128xi32>
    %c24_i32 = arith.constant 24 : i32
    %35 = vector.broadcast %c24_i32 : i32 to vector<8x128xi32>
    %36 = arith.cmpi slt, %7, %35 : vector<8x128xi32>
    %37 = arith.andi %34, %36 : vector<8x128xi1>
    %cst_14 = arith.constant -3.000000e+38 : f32
    %38 = vector.broadcast %cst_14 : f32 to vector<8x128xf32>
    %39 = arith.select %37, %6, %38 : vector<8x128xi1>, vector<8x128xf32>
    %cst_15 = arith.constant dense<0xFF800000> : vector<8xf32>
    %40 = vector.multi_reduction <maximumf>, %39, %cst_15 [1] : vector<8x128xf32> to vector<8xf32>
    %41 = vector.shape_cast %40 : vector<8xf32> to vector<8x1xf32>
    %42 = vector.shape_cast %41 : vector<8x1xf32> to vector<8x1xf32>
    %43 = vector.broadcast %42 : vector<8x1xf32> to vector<8x128xf32>
    %44 = arith.select %37, %43, %32 : vector<8x128xi1>, vector<8x128xf32>
    %c24_i32_16 = arith.constant 24 : i32
    %45 = vector.broadcast %c24_i32_16 : i32 to vector<8x128xi32>
    %46 = arith.cmpi sge, %7, %45 : vector<8x128xi32>
    %c32_i32 = arith.constant 32 : i32
    %47 = vector.broadcast %c32_i32 : i32 to vector<8x128xi32>
    %48 = arith.cmpi slt, %7, %47 : vector<8x128xi32>
    %49 = arith.andi %46, %48 : vector<8x128xi1>
    %cst_17 = arith.constant -3.000000e+38 : f32
    %50 = vector.broadcast %cst_17 : f32 to vector<8x128xf32>
    %51 = arith.select %49, %6, %50 : vector<8x128xi1>, vector<8x128xf32>
    %cst_18 = arith.constant dense<0xFF800000> : vector<8xf32>
    %52 = vector.multi_reduction <maximumf>, %51, %cst_18 [1] : vector<8x128xf32> to vector<8xf32>
    %53 = vector.shape_cast %52 : vector<8xf32> to vector<8x1xf32>
    %54 = vector.shape_cast %53 : vector<8x1xf32> to vector<8x1xf32>
    %55 = vector.broadcast %54 : vector<8x1xf32> to vector<8x128xf32>
    %56 = arith.select %49, %55, %44 : vector<8x128xi1>, vector<8x128xf32>
    %c32_i32_19 = arith.constant 32 : i32
    %57 = vector.broadcast %c32_i32_19 : i32 to vector<8x128xi32>
    %58 = arith.cmpi sge, %7, %57 : vector<8x128xi32>
    %c40_i32 = arith.constant 40 : i32
    %59 = vector.broadcast %c40_i32 : i32 to vector<8x128xi32>
    %60 = arith.cmpi slt, %7, %59 : vector<8x128xi32>
    %61 = arith.andi %58, %60 : vector<8x128xi1>
    %cst_20 = arith.constant -3.000000e+38 : f32
    %62 = vector.broadcast %cst_20 : f32 to vector<8x128xf32>
    %63 = arith.select %61, %6, %62 : vector<8x128xi1>, vector<8x128xf32>
    %cst_21 = arith.constant dense<0xFF800000> : vector<8xf32>
    %64 = vector.multi_reduction <maximumf>, %63, %cst_21 [1] : vector<8x128xf32> to vector<8xf32>
    %65 = vector.shape_cast %64 : vector<8xf32> to vector<8x1xf32>
    %66 = vector.shape_cast %65 : vector<8x1xf32> to vector<8x1xf32>
    %67 = vector.broadcast %66 : vector<8x1xf32> to vector<8x128xf32>
    %68 = arith.select %61, %67, %56 : vector<8x128xi1>, vector<8x128xf32>
    %c40_i32_22 = arith.constant 40 : i32
    %69 = vector.broadcast %c40_i32_22 : i32 to vector<8x128xi32>
    %70 = arith.cmpi sge, %7, %69 : vector<8x128xi32>
    %c48_i32 = arith.constant 48 : i32
    %71 = vector.broadcast %c48_i32 : i32 to vector<8x128xi32>
    %72 = arith.cmpi slt, %7, %71 : vector<8x128xi32>
    %73 = arith.andi %70, %72 : vector<8x128xi1>
    %cst_23 = arith.constant -3.000000e+38 : f32
    %74 = vector.broadcast %cst_23 : f32 to vector<8x128xf32>
    %75 = arith.select %73, %6, %74 : vector<8x128xi1>, vector<8x128xf32>
    %cst_24 = arith.constant dense<0xFF800000> : vector<8xf32>
    %76 = vector.multi_reduction <maximumf>, %75, %cst_24 [1] : vector<8x128xf32> to vector<8xf32>
    %77 = vector.shape_cast %76 : vector<8xf32> to vector<8x1xf32>
    %78 = vector.shape_cast %77 : vector<8x1xf32> to vector<8x1xf32>
    %79 = vector.broadcast %78 : vector<8x1xf32> to vector<8x128xf32>
    %80 = arith.select %73, %79, %68 : vector<8x128xi1>, vector<8x128xf32>
    %c48_i32_25 = arith.constant 48 : i32
    %81 = vector.broadcast %c48_i32_25 : i32 to vector<8x128xi32>
    %82 = arith.cmpi sge, %7, %81 : vector<8x128xi32>
    %c56_i32 = arith.constant 56 : i32
    %83 = vector.broadcast %c56_i32 : i32 to vector<8x128xi32>
    %84 = arith.cmpi slt, %7, %83 : vector<8x128xi32>
    %85 = arith.andi %82, %84 : vector<8x128xi1>
    %cst_26 = arith.constant -3.000000e+38 : f32
    %86 = vector.broadcast %cst_26 : f32 to vector<8x128xf32>
    %87 = arith.select %85, %6, %86 : vector<8x128xi1>, vector<8x128xf32>
    %cst_27 = arith.constant dense<0xFF800000> : vector<8xf32>
    %88 = vector.multi_reduction <maximumf>, %87, %cst_27 [1] : vector<8x128xf32> to vector<8xf32>
    %89 = vector.shape_cast %88 : vector<8xf32> to vector<8x1xf32>
    %90 = vector.shape_cast %89 : vector<8x1xf32> to vector<8x1xf32>
    %91 = vector.broadcast %90 : vector<8x1xf32> to vector<8x128xf32>
    %92 = arith.select %85, %91, %80 : vector<8x128xi1>, vector<8x128xf32>
    %c56_i32_28 = arith.constant 56 : i32
    %93 = vector.broadcast %c56_i32_28 : i32 to vector<8x128xi32>
    %94 = arith.cmpi sge, %7, %93 : vector<8x128xi32>
    %c64_i32 = arith.constant 64 : i32
    %95 = vector.broadcast %c64_i32 : i32 to vector<8x128xi32>
    %96 = arith.cmpi slt, %7, %95 : vector<8x128xi32>
    %97 = arith.andi %94, %96 : vector<8x128xi1>
    %cst_29 = arith.constant -3.000000e+38 : f32
    %98 = vector.broadcast %cst_29 : f32 to vector<8x128xf32>
    %99 = arith.select %97, %6, %98 : vector<8x128xi1>, vector<8x128xf32>
    %cst_30 = arith.constant dense<0xFF800000> : vector<8xf32>
    %100 = vector.multi_reduction <maximumf>, %99, %cst_30 [1] : vector<8x128xf32> to vector<8xf32>
    %101 = vector.shape_cast %100 : vector<8xf32> to vector<8x1xf32>
    %102 = vector.shape_cast %101 : vector<8x1xf32> to vector<8x1xf32>
    %103 = vector.broadcast %102 : vector<8x1xf32> to vector<8x128xf32>
    %104 = arith.select %97, %103, %92 : vector<8x128xi1>, vector<8x128xf32>
    %c64_i32_31 = arith.constant 64 : i32
    %105 = vector.broadcast %c64_i32_31 : i32 to vector<8x128xi32>
    %106 = arith.cmpi sge, %7, %105 : vector<8x128xi32>
    %c72_i32 = arith.constant 72 : i32
    %107 = vector.broadcast %c72_i32 : i32 to vector<8x128xi32>
    %108 = arith.cmpi slt, %7, %107 : vector<8x128xi32>
    %109 = arith.andi %106, %108 : vector<8x128xi1>
    %cst_32 = arith.constant -3.000000e+38 : f32
    %110 = vector.broadcast %cst_32 : f32 to vector<8x128xf32>
    %111 = arith.select %109, %6, %110 : vector<8x128xi1>, vector<8x128xf32>
    %cst_33 = arith.constant dense<0xFF800000> : vector<8xf32>
    %112 = vector.multi_reduction <maximumf>, %111, %cst_33 [1] : vector<8x128xf32> to vector<8xf32>
    %113 = vector.shape_cast %112 : vector<8xf32> to vector<8x1xf32>
    %114 = vector.shape_cast %113 : vector<8x1xf32> to vector<8x1xf32>
    %115 = vector.broadcast %114 : vector<8x1xf32> to vector<8x128xf32>
    %116 = arith.select %109, %115, %104 : vector<8x128xi1>, vector<8x128xf32>
    %117 = arith.subf %6, %116 : vector<8x128xf32>
    %118 = math.exp %117 : vector<8x128xf32>
    %cst_34 = arith.constant dense<0.000000e+00> : vector<8x128xf32>
    %119 = tpu.matmul %118, %2, %cst_34 {dimension_numbers = #tpu.dot_dimension_numbers<[1], [0], [0], [1], [0, 0, 1, 1], [], []>} : vector<8x128xf32>, vector<128x128xf32>, vector<8x128xf32> -> vector<8x128xf32>
    %120 = tpu.reciprocal %119 {approx = true} : vector<8x128xf32> -> vector<8x128xf32>
    %121 = arith.mulf %118, %120 : vector<8x128xf32>
    %122 = math.exp %121 : vector<8x128xf32>
    %cst_35 = arith.constant dense<0.000000e+00> : vector<8x128xf32>
    %123 = tpu.matmul %122, %2, %cst_35 {dimension_numbers = #tpu.dot_dimension_numbers<[1], [0], [0], [1], [0, 0, 1, 1], [], []>} : vector<8x128xf32>, vector<128x128xf32>, vector<8x128xf32> -> vector<8x128xf32>
    %124 = tpu.reciprocal %123 {approx = true} : vector<8x128xf32> -> vector<8x128xf32>
    %125 = arith.mulf %122, %124 : vector<8x128xf32>
    %c0_36 = arith.constant 0 : index
    %c0_37 = arith.constant 0 : index
    %126 = vector.load %arg4[%c0_36, %c0_37] : memref<1x128xf32, #tpu.memory_space<vmem>>, vector<1x128xf32>
    %127 = vector.broadcast %126 : vector<1x128xf32> to vector<8x128xf32>
    %128 = arith.mulf %125, %127 : vector<8x128xf32>
    %cst_38 = arith.constant dense<0.000000e+00> : vector<8x128xf32>
    %129 = tpu.matmul %128, %2, %cst_38 {dimension_numbers = #tpu.dot_dimension_numbers<[1], [0], [0], [1], [0, 0, 1, 1], [], []>} : vector<8x128xf32>, vector<128x128xf32>, vector<8x128xf32> -> vector<8x128xf32>
    %c0_39 = arith.constant 0 : index
    %c0_40 = arith.constant 0 : index
    %130 = vector.load %arg5[%c0_39, %c0_40] : memref<1x128xf32, #tpu.memory_space<vmem>>, vector<1x128xf32>
    %131 = vector.broadcast %130 : vector<1x128xf32> to vector<8x128xf32>
    %132 = arith.mulf %125, %131 : vector<8x128xf32>
    %cst_41 = arith.constant dense<0.000000e+00> : vector<8x128xf32>
    %133 = tpu.matmul %132, %2, %cst_41 {dimension_numbers = #tpu.dot_dimension_numbers<[1], [0], [0], [1], [0, 0, 1, 1], [], []>} : vector<8x128xf32>, vector<128x128xf32>, vector<8x128xf32> -> vector<8x128xf32>
    %134 = arith.mulf %129, %129 : vector<8x128xf32>
    %135 = arith.mulf %133, %133 : vector<8x128xf32>
    %136 = arith.addf %134, %135 : vector<8x128xf32>
    %cst_42 = arith.constant 9.99999968E-21 : f32
    %137 = vector.broadcast %cst_42 : f32 to vector<8x128xf32>
    %138 = arith.maximumf %136, %137 : vector<8x128xf32>
    %139 = math.rsqrt %138 : vector<8x128xf32>
    %140 = arith.mulf %129, %139 : vector<8x128xf32>
    %141 = arith.mulf %133, %139 : vector<8x128xf32>
    %cst_43 = arith.constant 8.244150e+00 : f32
    %142 = vector.broadcast %cst_43 : f32 to vector<8x128xf32>
    %143 = arith.mulf %140, %142 : vector<8x128xf32>
    %cst_44 = arith.constant 3.00062537 : f32
    %144 = vector.broadcast %cst_44 : f32 to vector<8x128xf32>
    %145 = arith.mulf %141, %144 : vector<8x128xf32>
    %146 = arith.addf %143, %145 : vector<8x128xf32>
    %cst_45 = arith.constant 8.244150e+00 : f32
    %147 = vector.broadcast %cst_45 : f32 to vector<8x128xf32>
    %148 = arith.mulf %141, %147 : vector<8x128xf32>
    %cst_46 = arith.constant 3.00062537 : f32
    %149 = vector.broadcast %cst_46 : f32 to vector<8x128xf32>
    %150 = arith.mulf %140, %149 : vector<8x128xf32>
    %151 = arith.subf %148, %150 : vector<8x128xf32>
    %cst_47 = arith.constant dense<0.000000e+00> : vector<8xf32>
    %152 = vector.multi_reduction <add>, %146, %cst_47 [1] : vector<8x128xf32> to vector<8xf32>
    %153 = vector.shape_cast %152 : vector<8xf32> to vector<8x1xf32>
    %cst_48 = arith.constant 0.00154320989 : f32
    %154 = vector.broadcast %cst_48 : f32 to vector<8x1xf32>
    %155 = arith.mulf %153, %154 : vector<8x1xf32>
    %cst_49 = arith.constant dense<0.000000e+00> : vector<8xf32>
    %156 = vector.multi_reduction <add>, %151, %cst_49 [1] : vector<8x128xf32> to vector<8xf32>
    %157 = vector.shape_cast %156 : vector<8xf32> to vector<8x1xf32>
    %cst_50 = arith.constant 0.00154320989 : f32
    %158 = vector.broadcast %cst_50 : f32 to vector<8x1xf32>
    %159 = arith.mulf %157, %158 : vector<8x1xf32>
    %c72_i32_51 = arith.constant 72 : i32
    %160 = vector.broadcast %c72_i32_51 : i32 to vector<8x128xi32>
    %161 = arith.cmpi eq, %7, %160 : vector<8x128xi32>
    %162 = vector.shape_cast %155 : vector<8x1xf32> to vector<8x1xf32>
    %163 = vector.broadcast %162 : vector<8x1xf32> to vector<8x128xf32>
    %164 = arith.select %161, %163, %121 : vector<8x128xi1>, vector<8x128xf32>
    %c73_i32 = arith.constant 73 : i32
    %165 = vector.broadcast %c73_i32 : i32 to vector<8x128xi32>
    %166 = arith.cmpi eq, %7, %165 : vector<8x128xi32>
    %167 = vector.shape_cast %159 : vector<8x1xf32> to vector<8x1xf32>
    %168 = vector.broadcast %167 : vector<8x1xf32> to vector<8x128xf32>
    %169 = arith.select %166, %168, %164 : vector<8x128xi1>, vector<8x128xf32>
    %c0_52 = arith.constant 0 : index
    %c0_53 = arith.constant 0 : index
    %170 = vector.load %arg7[%c0_52, %c0_53] : memref<8x128xf32, #tpu.memory_space<vmem>>, vector<8x128xf32>
    tpu.vector_store %arg7[%c0_52, %c0_53], %169 {strides = array<i32>} : memref<8x128xf32, #tpu.memory_space<vmem>>, vector<8x128xf32>,
    return
  }
  func.func @transform_0(%arg0: i32) -> (i32, i32) {
    %c0_i32 = arith.constant 0 : i32
    %c0_i32_0 = arith.constant 0 : i32
    return %arg0, %c0_i32 : i32, i32
  }
  func.func @transform_1(%arg0: i32) -> (i32, i32) {
    %c0_i32 = arith.constant 0 : i32
    %c0_i32_0 = arith.constant 0 : i32
    %c0_i32_1 = arith.constant 0 : i32
    return %c0_i32, %c0_i32_0 : i32, i32
  }
  func.func @transform_2(%arg0: i32) -> (i32, i32) {
    %c0_i32 = arith.constant 0 : i32
    %c0_i32_0 = arith.constant 0 : i32
    %c0_i32_1 = arith.constant 0 : i32
    return %c0_i32, %c0_i32_0 : i32, i32
  }
  func.func @transform_3(%arg0: i32) -> (i32, i32) {
    %c0_i32 = arith.constant 0 : i32
    %c0_i32_0 = arith.constant 0 : i32
    %c0_i32_1 = arith.constant 0 : i32
    return %c0_i32, %c0_i32_0 : i32, i32
  }
  func.func @transform_4(%arg0: i32) -> (i32, i32) {
    %c0_i32 = arith.constant 0 : i32
    %c0_i32_0 = arith.constant 0 : i32
    %c0_i32_1 = arith.constant 0 : i32
    return %c0_i32, %c0_i32_0 : i32, i32
  }
  func.func @transform_5(%arg0: i32) -> (i32, i32) {
    %c0_i32 = arith.constant 0 : i32
    %c0_i32_0 = arith.constant 0 : i32
    %c0_i32_1 = arith.constant 0 : i32
    return %c0_i32, %c0_i32_0 : i32, i32
  }
  func.func @transform_6(%arg0: i32) -> (i32, i32) {
    %c0_i32 = arith.constant 0 : i32
    %c0_i32_0 = arith.constant 0 : i32
    return %arg0, %c0_i32 : i32, i32
  }
}

</mosaic_0001>

<llo_original>
// kernel: tpu_custom_call.1
$region0: #{tpu_custom_call.1}
  #allocation0 [shape = 'u32[]', space=smem, size = 0x4, offset = 0x4, fixed_abs, tag = 'smem constant byte address 0x4 - core index']
  #allocation1 [shape = 'u32[144,128]{1,0:T(1,128)}', space=vmem, size = 0x12000, scoped, tag = 'internal scratch']
  %s0 = inlined_call_operand.hbm [shape: f32[8,256], index: 0, kind: input, shape index: {}]
  %s1 = inlined_call_operand.hbm [shape: f32[256,128], index: 1, kind: input, shape index: {}]
  %s2 = inlined_call_operand.vmem [shape: f32[1,128], index: 2, kind: input, shape index: {}]
  %s3 = inlined_call_operand.vmem [shape: f32[1,128], index: 3, kind: input, shape index: {}]
  %s4 = inlined_call_operand.vmem [shape: f32[1,128], index: 4, kind: input, shape index: {}]
  %s5 = inlined_call_operand.hbm [shape: f32[128,128], index: 5, kind: input, shape index: {}]
  %s6 = inlined_call_operand.hbm [shape: f32[8,128], index: 6, kind: output, shape index: {}]
  %s7 = sld [smem:[#allocation0]]
  $region46: #{tpu_custom_call.1} parent=0
    _
  %s9 = ssub.s32 1, %s7
  %s10 = scalar_select 0, %s9, %s7
  $region1: #{tpu_custom_call.1} parent=0
    #allocation2 [shape = 'u8[8192]{0}', space=vmem, size = 0x2000, scoped, tag = 'input window, operand 0, single buffered']
    #allocation3 [shape = 's32[1]{0}', space=sflag, size = 0x4, scoped, tag = 'scoped memory for tpu_custom_call.1']
    #allocation4 [shape = 's32[1]{0}', space=sflag, size = 0x4, scoped, tag = 'scoped memory for tpu_custom_call.1']
    #allocation5 [shape = 'u8[131072]{0}', space=vmem, size = 0x20000, scoped, tag = 'input window, operand 1, single buffered']
    #allocation6 [shape = 's32[1]{0}', space=sflag, size = 0x4, scoped, tag = 'scoped memory for tpu_custom_call.1']
    #allocation7 [shape = 'u8[65536]{0}', space=vmem, size = 0x10000, scoped, tag = 'input window, operand 5, single buffered']
    #allocation8 [shape = 'u8[4096]{0}', space=vmem, size = 0x1000, scoped, tag = 'output window, operand 0, single buffered']
    %11 = vsyncpa [#allocation3], 0
    %12 = vsyncpa [#allocation6], 0
    %13 = vsyncpa [#allocation4], 0
    // Predicated region
    $region2: #{tpu_custom_call.1} parent=1 // pred_check
      _
    $region3: #{tpu_custom_call.1} parent=1 // pred_check_branch
      %15 = sbr.rel (0) target = $region5
    $region4: #{tpu_custom_call.1} parent=1 // pred_region
      %s17 = ssub.s32 256, 256
      %18 = vsyncadd [#allocation3], %s17
      %s20 = sshll.u32 [#allocation2], 4
      %s21 = int_to_ptr.vmem [resolvable:$true] %s20
      %23 = dma.hbm_to_vmem [thread:$0]  %s0, 256, %s21, [#allocation3]
    $region5: #{tpu_custom_call.1} parent=1 // pred_fallthru
      _
    // Predicated region
    $region6: #{tpu_custom_call.1} parent=1 // pred_check
      _
    $region7: #{tpu_custom_call.1} parent=1 // pred_check_branch
      %25 = sbr.rel (0) target = $region9
    $region8: #{tpu_custom_call.1} parent=1 // pred_region
      %s27 = ssub.s32 4096, 4096
      %28 = vsyncadd [#allocation6], %s27
      %s29 = sshll.u32 [#allocation5], 4
      %s30 = int_to_ptr.vmem [resolvable:$true] %s29
      %35 = dma.hbm_to_vmem [thread:$0]  %s1, 4096, %s30, [#allocation6], 128, 128, 8
    $region9: #{tpu_custom_call.1} parent=1 // pred_fallthru
      _
    // Predicated region
    $region10: #{tpu_custom_call.1} parent=1 // pred_check
      _
    $region11: #{tpu_custom_call.1} parent=1 // pred_check_branch
      %37 = sbr.rel (0) target = $region13
    $region12: #{tpu_custom_call.1} parent=1 // pred_region
      _
    $region13: #{tpu_custom_call.1} parent=1 // pred_fallthru
      _
    // Predicated region
    $region14: #{tpu_custom_call.1} parent=1 // pred_check
      _
    $region15: #{tpu_custom_call.1} parent=1 // pred_check_branch
      %39 = sbr.rel (0) target = $region17
    $region16: #{tpu_custom_call.1} parent=1 // pred_region
      _
    $region17: #{tpu_custom_call.1} parent=1 // pred_fallthru
      _
    // Predicated region
    $region18: #{tpu_custom_call.1} parent=1 // pred_check
      _
    $region19: #{tpu_custom_call.1} parent=1 // pred_check_branch
      %41 = sbr.rel (0) target = $region21
    $region20: #{tpu_custom_call.1} parent=1 // pred_region
      _
    $region21: #{tpu_custom_call.1} parent=1 // pred_fallthru
      _
    // Predicated region
    $region22: #{tpu_custom_call.1} parent=1 // pred_check
      _
    $region23: #{tpu_custom_call.1} parent=1 // pred_check_branch
      %43 = sbr.rel (0) target = $region25
    $region24: #{tpu_custom_call.1} parent=1 // pred_region
      %s45 = ssub.s32 2048, 2048
      %46 = vsyncadd [#allocation6], %s45
      %s47 = sshll.u32 [#allocation7], 4
      %s48 = int_to_ptr.vmem [resolvable:$true] %s47
      %53 = dma.hbm_to_vmem [thread:$0]  %s5, 2048, %s48, [#allocation6], 128, 128, 8
    $region25: #{tpu_custom_call.1} parent=1 // pred_fallthru
      _
    // Predicated region
    $region26: #{tpu_custom_call.1} parent=1 // pred_check
      _
    $region27: #{tpu_custom_call.1} parent=1 // pred_check_branch
      %55 = sbr.rel (0) target = $region29
    $region28: #{tpu_custom_call.1} parent=1 // pred_region
      %56 = dma.done [#allocation3], 256
    $region29: #{tpu_custom_call.1} parent=1 // pred_fallthru
      _
    // Predicated region
    $region30: #{tpu_custom_call.1} parent=1 // pred_check
      _
    $region31: #{tpu_custom_call.1} parent=1 // pred_check_branch
      %58 = sbr.rel (0) target = $region33
    $region32: #{tpu_custom_call.1} parent=1 // pred_region
      %59 = dma.done [#allocation6], 4096
    $region33: #{tpu_custom_call.1} parent=1 // pred_fallthru
      _
    // Predicated region
    $region34: #{tpu_custom_call.1} parent=1 // pred_check
      _
    $region35: #{tpu_custom_call.1} parent=1 // pred_check_branch
      %61 = sbr.rel (0) target = $region37
    $region36: #{tpu_custom_call.1} parent=1 // pred_region
      %62 = dma.done [#allocation6], 2048
    $region37: #{tpu_custom_call.1} parent=1 // pred_fallthru
      _
    %v63 = vld [vmem:[#allocation2] sm:$0xff]
    %v64 = vld [vmem:[#allocation2 + $0x8] sm:$0xff]
    %v65 = vld [vmem:[#allocation5] sm:$0xff]
    %v66 = vld [vmem:[#allocation5 + $0x8] sm:$0xff]
    %v67 = vld [vmem:[#allocation5 + $0x10] sm:$0xff]
    %v68 = vld [vmem:[#allocation5 + $0x18] sm:$0xff]
    %v69 = vld [vmem:[#allocation5 + $0x20] sm:$0xff]
    %v70 = vld [vmem:[#allocation5 + $0x28] sm:$0xff]
    %v71 = vld [vmem:[#allocation5 + $0x30] sm:$0xff]
    %v72 = vld [vmem:[#allocation5 + $0x38] sm:$0xff]
    %v73 = vld [vmem:[#allocation5 + $0x40] sm:$0xff]
    %v74 = vld [vmem:[#allocation5 + $0x48] sm:$0xff]
    %v75 = vld [vmem:[#allocation5 + $0x50] sm:$0xff]
    %v76 = vld [vmem:[#allocation5 + $0x58] sm:$0xff]
    %v77 = vld [vmem:[#allocation5 + $0x60] sm:$0xff]
    %v78 = vld [vmem:[#allocation5 + $0x68] sm:$0xff]
    %v79 = vld [vmem:[#allocation5 + $0x70] sm:$0xff]
    %v80 = vld [vmem:[#allocation5 + $0x78] sm:$0xff]
    %v81 = vld [vmem:[#allocation5 + $0x80] sm:$0xff]
    %v82 = vld [vmem:[#allocation5 + $0x88] sm:$0xff]
    %v83 = vld [vmem:[#allocation5 + $0x90] sm:$0xff]
    %v84 = vld [vmem:[#allocation5 + $0x98] sm:$0xff]
    %v85 = vld [vmem:[#allocation5 + $0xa0] sm:$0xff]
    %v86 = vld [vmem:[#allocation5 + $0xa8] sm:$0xff]
    %v87 = vld [vmem:[#allocation5 + $0xb0] sm:$0xff]
    %v88 = vld [vmem:[#allocation5 + $0xb8] sm:$0xff]
    %v89 = vld [vmem:[#allocation5 + $0xc0] sm:$0xff]
    %v90 = vld [vmem:[#allocation5 + $0xc8] sm:$0xff]
    %v91 = vld [vmem:[#allocation5 + $0xd0] sm:$0xff]
    %v92 = vld [vmem:[#allocation5 + $0xd8] sm:$0xff]
    %v93 = vld [vmem:[#allocation5 + $0xe0] sm:$0xff]
    %v94 = vld [vmem:[#allocation5 + $0xe8] sm:$0xff]
    %v95 = vld [vmem:[#allocation5 + $0xf0] sm:$0xff]
    %v96 = vld [vmem:[#allocation5 + $0xf8] sm:$0xff]
    %v97 = vld [vmem:[#allocation7] sm:$0xff]
    %v98 = vld [vmem:[#allocation7 + $0x8] sm:$0xff]
    %v99 = vld [vmem:[#allocation7 + $0x10] sm:$0xff]
    %v100 = vld [vmem:[#allocation7 + $0x18] sm:$0xff]
    %v101 = vld [vmem:[#allocation7 + $0x20] sm:$0xff]
    %v102 = vld [vmem:[#allocation7 + $0x28] sm:$0xff]
    %v103 = vld [vmem:[#allocation7 + $0x30] sm:$0xff]
    %v104 = vld [vmem:[#allocation7 + $0x38] sm:$0xff]
    %v105 = vld [vmem:[#allocation7 + $0x40] sm:$0xff]
    %v106 = vld [vmem:[#allocation7 + $0x48] sm:$0xff]
    %v107 = vld [vmem:[#allocation7 + $0x50] sm:$0xff]
    %v108 = vld [vmem:[#allocation7 + $0x58] sm:$0xff]
    %v109 = vld [vmem:[#allocation7 + $0x60] sm:$0xff]
    %v110 = vld [vmem:[#allocation7 + $0x68] sm:$0xff]
    %v111 = vld [vmem:[#allocation7 + $0x70] sm:$0xff]
    %v112 = vld [vmem:[#allocation7 + $0x78] sm:$0xff]
    %v113 = vld [vmem:[%s2] sm:$0x1]
    %v115 = vlaneseq
    %v116 = vshrl.u32 %v115, 7
    %v117 = vsub.s32 0, %v116
    %v118 = vrot.slane %v113, %v117
    %120 = vmatprep.subr.mxu0 0.0
    %121 = vmatpush1.msra.mxu0 %v65
    %122 = vmatprep.subr.mxu0 0.0
    %123 = vmatpush1.msra.mxu0 %v66
    %124 = vmatprep.subr.mxu0 0.0
    %125 = vmatpush1.msra.mxu0 %v67
    %126 = vmatprep.subr.mxu0 0.0
    %127 = vmatpush1.msra.mxu0 %v68
    %128 = vmatprep.subr.mxu0 0.0
    %129 = vmatpush1.msra.mxu0 %v69
    %130 = vmatprep.subr.mxu0 0.0
    %131 = vmatpush1.msra.mxu0 %v70
    %132 = vmatprep.subr.mxu0 0.0
    %133 = vmatpush1.msra.mxu0 %v71
    %134 = vmatprep.subr.mxu0 0.0
    %135 = vmatpush1.msra.mxu0 %v72
    %136 = vmatprep.subr.mxu0 0.0
    %137 = vmatpush1.msra.mxu0 %v73
    %138 = vmatprep.subr.mxu0 0.0
    %139 = vmatpush1.msra.mxu0 %v74
    %140 = vmatprep.subr.mxu0 0.0
    %141 = vmatpush1.msra.mxu0 %v75
    %142 = vmatprep.subr.mxu0 0.0
    %143 = vmatpush1.msra.mxu0 %v76
    %144 = vmatprep.subr.mxu0 0.0
    %145 = vmatpush1.msra.mxu0 %v77
    %146 = vmatprep.subr.mxu0 0.0
    %147 = vmatpush1.msra.mxu0 %v78
    %148 = vmatprep.subr.mxu0 0.0
    %149 = vmatpush1.msra.mxu0 %v79
    %150 = vmatprep.subr.mxu0 0.0
    %151 = vmatpush1.msra.mxu0 %v80
    %152 = vmatprep.subr.mxu0 0.0
    %153 = vmatpush1.msra.mxu0 %v81
    %154 = vmatprep.subr.mxu0 0.0
    %155 = vmatpush1.msra.mxu0 %v82
    %156 = vmatprep.subr.mxu0 0.0
    %157 = vmatpush1.msra.mxu0 %v83
    %158 = vmatprep.subr.mxu0 0.0
    %159 = vmatpush1.msra.mxu0 %v84
    %160 = vmatprep.subr.mxu0 0.0
    %161 = vmatpush1.msra.mxu0 %v85
    %162 = vmatprep.subr.mxu0 0.0
    %163 = vmatpush1.msra.mxu0 %v86
    %164 = vmatprep.subr.mxu0 0.0
    %165 = vmatpush1.msra.mxu0 %v87
    %166 = vmatprep.subr.mxu0 0.0
    %167 = vmatpush1.msra.mxu0 %v88
    %168 = vmatprep.subr.mxu0 0.0
    %169 = vmatpush1.msra.mxu0 %v89
    %170 = vmatprep.subr.mxu0 0.0
    %171 = vmatpush1.msra.mxu0 %v90
    %172 = vmatprep.subr.mxu0 0.0
    %173 = vmatpush1.msra.mxu0 %v91
    %174 = vmatprep.subr.mxu0 0.0
    %175 = vmatpush1.msra.mxu0 %v92
    %176 = vmatprep.subr.mxu0 0.0
    %177 = vmatpush1.msra.mxu0 %v93
    %178 = vmatprep.subr.mxu0 0.0
    %179 = vmatpush1.msra.mxu0 %v94
    %180 = vmatprep.subr.mxu0 0.0
    %181 = vmatpush1.msra.mxu0 %v95
    %182 = vmatprep.subr.mxu0 0.0
    %183 = vmatpush1.msra.mxu0 %v96
    %184 = vmatprep.mubr.f32.mxu0 %v64
    %185 = vmatmul.mubr.f32.gmra.mrb[0].mxu0 %v63
    %v186 = vpop.f32.mrb[0].mxu0
    %v187 = vadd.f32 %v118, %v186
    %v188 = vpop.f32.mrb[0].mxu0
    %189 = vdwg.mxu0
    %v190 = vlaneseq
    %v191 = vand.u32 %v190, 127
    %vm192 = vcmp.ge.s32.totalorder %v191, 0
    %vm193 = vcmp.lt.s32.totalorder %v191, 8
    %vm194 = vmand %vm192, %vm193
    %v195 = vsel %vm194, %v187, -3e+38
    %196 = vmax.xlane.f32.xlu0 %v195
    %v197 = vpop.xlane.xlu0 %196
    %v198 = vsel %vm194, %v197, 0.0
    %vm199 = vcmp.ge.s32.totalorder %v191, 8
    %vm200 = vcmp.lt.s32.totalorder %v191, 16
    %vm201 = vmand %vm199, %vm200
    %v202 = vsel %vm201, %v187, -3e+38
    %203 = vmax.xlane.f32.xlu0 %v202
    %v204 = vpop.xlane.xlu0 %203
    %v205 = vsel %vm201, %v204, %v198
    %vm206 = vcmp.ge.s32.totalorder %v191, 16
    %vm207 = vcmp.lt.s32.totalorder %v191, 24
    %vm208 = vmand %vm206, %vm207
    %v209 = vsel %vm208, %v187, -3e+38
    %210 = vmax.xlane.f32.xlu0 %v209
    %v211 = vpop.xlane.xlu0 %210
    %v212 = vsel %vm208, %v211, %v205
    %vm213 = vcmp.ge.s32.totalorder %v191, 24
    %vm214 = vcmp.lt.s32.totalorder %v191, 32
    %vm215 = vmand %vm213, %vm214
    %v216 = vsel %vm215, %v187, -3e+38
    %217 = vmax.xlane.f32.xlu0 %v216
    %v218 = vpop.xlane.xlu0 %217
    %v219 = vsel %vm215, %v218, %v212
    %vm220 = vcmp.ge.s32.totalorder %v191, 32
    %vm221 = vcmp.lt.s32.totalorder %v191, 40
    %vm222 = vmand %vm220, %vm221
    %v223 = vsel %vm222, %v187, -3e+38
    %224 = vmax.xlane.f32.xlu0 %v223
    %v225 = vpop.xlane.xlu0 %224
    %v226 = vsel %vm222, %v225, %v219
    %vm227 = vcmp.ge.s32.totalorder %v191, 40
    %vm228 = vcmp.lt.s32.totalorder %v191, 48
    %vm229 = vmand %vm227, %vm228
    %v230 = vsel %vm229, %v187, -3e+38
    %231 = vmax.xlane.f32.xlu0 %v230
    %v232 = vpop.xlane.xlu0 %231
    %v233 = vsel %vm229, %v232, %v226
    %vm234 = vcmp.ge.s32.totalorder %v191, 48
    %vm235 = vcmp.lt.s32.totalorder %v191, 56
    %vm236 = vmand %vm234, %vm235
    %v237 = vsel %vm236, %v187, -3e+38
    %238 = vmax.xlane.f32.xlu0 %v237
    %v239 = vpop.xlane.xlu0 %238
    %v240 = vsel %vm236, %v239, %v233
    %vm241 = vcmp.ge.s32.totalorder %v191, 56
    %vm242 = vcmp.lt.s32.totalorder %v191, 64
    %vm243 = vmand %vm241, %vm242
    %v244 = vsel %vm243, %v187, -3e+38
    %245 = vmax.xlane.f32.xlu0 %v244
    %v246 = vpop.xlane.xlu0 %245
    %v247 = vsel %vm243, %v246, %v240
    %vm248 = vcmp.ge.s32.totalorder %v191, 64
    %vm249 = vcmp.lt.s32.totalorder %v191, 72
    %vm250 = vmand %vm248, %vm249
    %v251 = vsel %vm250, %v187, -3e+38
    %252 = vmax.xlane.f32.xlu0 %v251
    %v253 = vpop.xlane.xlu0 %252
    %v254 = vsel %vm250, %v253, %v247
    %v255 = vsub.f32 %v187, %v254
    %v256 = vmul.f32 %v255, 1.442695
    %v257 = vpow.pop %v256
    %258 = vmatprep.subr.mxu0 0.0
    %259 = vmatpush1.msra.mxu0 %v97
    %260 = vmatprep.subr.mxu0 0.0
    %261 = vmatpush1.msra.mxu0 %v98
    %262 = vmatprep.subr.mxu0 0.0
    %263 = vmatpush1.msra.mxu0 %v99
    %264 = vmatprep.subr.mxu0 0.0
    %265 = vmatpush1.msra.mxu0 %v100
    %266 = vmatprep.subr.mxu0 0.0
    %267 = vmatpush1.msra.mxu0 %v101
    %268 = vmatprep.subr.mxu0 0.0
    %269 = vmatpush1.msra.mxu0 %v102
    %270 = vmatprep.subr.mxu0 0.0
    %271 = vmatpush1.msra.mxu0 %v103
    %272 = vmatprep.subr.mxu0 0.0
    %273 = vmatpush1.msra.mxu0 %v104
    %274 = vmatprep.subr.mxu0 0.0
    %275 = vmatpush1.msra.mxu0 %v105
    %276 = vmatprep.subr.mxu0 0.0
    %277 = vmatpush1.msra.mxu0 %v106
    %278 = vmatprep.subr.mxu0 0.0
    %279 = vmatpush1.msra.mxu0 %v107
    %280 = vmatprep.subr.mxu0 0.0
    %281 = vmatpush1.msra.mxu0 %v108
    %282 = vmatprep.subr.mxu0 0.0
    %283 = vmatpush1.msra.mxu0 %v109
    %284 = vmatprep.subr.mxu0 0.0
    %285 = vmatpush1.msra.mxu0 %v110
    %286 = vmatprep.subr.mxu0 0.0
    %287 = vmatpush1.msra.mxu0 %v111
    %288 = vmatprep.subr.mxu0 0.0
    %289 = vmatpush1.msra.mxu0 %v112
    %290 = vmatprep.subr.mxu0 0.0
    %291 = vmatpush1.msra.mxu0 0.0
    %292 = vmatprep.subr.mxu0 0.0
    %293 = vmatpush1.msra.mxu0 0.0
    %294 = vmatprep.subr.mxu0 0.0
    %295 = vmatpush1.msra.mxu0 0.0
    %296 = vmatprep.subr.mxu0 0.0
    %297 = vmatpush1.msra.mxu0 0.0
    %298 = vmatprep.subr.mxu0 0.0
    %299 = vmatpush1.msra.mxu0 0.0
    %300 = vmatprep.subr.mxu0 0.0
    %301 = vmatpush1.msra.mxu0 0.0
    %302 = vmatprep.subr.mxu0 0.0
    %303 = vmatpush1.msra.mxu0 0.0
    %304 = vmatprep.subr.mxu0 0.0
    %305 = vmatpush1.msra.mxu0 0.0
    %306 = vmatprep.subr.mxu0 0.0
    %307 = vmatpush1.msra.mxu0 0.0
    %308 = vmatprep.subr.mxu0 0.0
    %309 = vmatpush1.msra.mxu0 0.0
    %310 = vmatprep.subr.mxu0 0.0
    %311 = vmatpush1.msra.mxu0 0.0
    %312 = vmatprep.subr.mxu0 0.0
    %313 = vmatpush1.msra.mxu0 0.0
    %314 = vmatprep.subr.mxu0 0.0
    %315 = vmatpush1.msra.mxu0 0.0
    %316 = vmatprep.subr.mxu0 0.0
    %317 = vmatpush1.msra.mxu0 0.0
    %318 = vmatprep.subr.mxu0 0.0
    %319 = vmatpush1.msra.mxu0 0.0
    %320 = vmatprep.subr.mxu0 0.0
    %321 = vmatpush1.msra.mxu0 0.0
    %322 = vmatprep.mubr.f32.mxu0 0.0
    %323 = vmatmul.mubr.f32.gmra.mrb[0].mxu0 %v257
    %v324 = vpop.f32.mrb[0].mxu0
    %v325 = vadd.f32 0.0, %v324
    %v326 = vpop.f32.mrb[0].mxu0
    %327 = vdwg.mxu0
    %v328 = vrcp.pop %v325
    %v329 = vmul.f32 %v257, %v328
    %v330 = vmul.f32 %v329, 1.442695
    %v331 = vpow.pop %v330
    %332 = vmatprep.subr.mxu0 0.0
    %333 = vmatpush1.msra.mxu0 %v97
    %334 = vmatprep.subr.mxu0 0.0
    %335 = vmatpush1.msra.mxu0 %v98
    %336 = vmatprep.subr.mxu0 0.0
    %337 = vmatpush1.msra.mxu0 %v99
    %338 = vmatprep.subr.mxu0 0.0
    %339 = vmatpush1.msra.mxu0 %v100
    %340 = vmatprep.subr.mxu0 0.0
    %341 = vmatpush1.msra.mxu0 %v101
    %342 = vmatprep.subr.mxu0 0.0
    %343 = vmatpush1.msra.mxu0 %v102
    %344 = vmatprep.subr.mxu0 0.0
    %345 = vmatpush1.msra.mxu0 %v103
    %346 = vmatprep.subr.mxu0 0.0
    %347 = vmatpush1.msra.mxu0 %v104
    %348 = vmatprep.subr.mxu0 0.0
    %349 = vmatpush1.msra.mxu0 %v105
    %350 = vmatprep.subr.mxu0 0.0
    %351 = vmatpush1.msra.mxu0 %v106
    %352 = vmatprep.subr.mxu0 0.0
    %353 = vmatpush1.msra.mxu0 %v107
    %354 = vmatprep.subr.mxu0 0.0
    %355 = vmatpush1.msra.mxu0 %v108
    %356 = vmatprep.subr.mxu0 0.0
    %357 = vmatpush1.msra.mxu0 %v109
    %358 = vmatprep.subr.mxu0 0.0
    %359 = vmatpush1.msra.mxu0 %v110
    %360 = vmatprep.subr.mxu0 0.0
    %361 = vmatpush1.msra.mxu0 %v111
    %362 = vmatprep.subr.mxu0 0.0
    %363 = vmatpush1.msra.mxu0 %v112
    %364 = vmatprep.subr.mxu0 0.0
    %365 = vmatpush1.msra.mxu0 0.0
    %366 = vmatprep.subr.mxu0 0.0
    %367 = vmatpush1.msra.mxu0 0.0
    %368 = vmatprep.subr.mxu0 0.0
    %369 = vmatpush1.msra.mxu0 0.0
    %370 = vmatprep.subr.mxu0 0.0
    %371 = vmatpush1.msra.mxu0 0.0
    %372 = vmatprep.subr.mxu0 0.0
    %373 = vmatpush1.msra.mxu0 0.0
    %374 = vmatprep.subr.mxu0 0.0
    %375 = vmatpush1.msra.mxu0 0.0
    %376 = vmatprep.subr.mxu0 0.0
    %377 = vmatpush1.msra.mxu0 0.0
    %378 = vmatprep.subr.mxu0 0.0
    %379 = vmatpush1.msra.mxu0 0.0
    %380 = vmatprep.subr.mxu0 0.0
    %381 = vmatpush1.msra.mxu0 0.0
    %382 = vmatprep.subr.mxu0 0.0
    %383 = vmatpush1.msra.mxu0 0.0
    %384 = vmatprep.subr.mxu0 0.0
    %385 = vmatpush1.msra.mxu0 0.0
    %386 = vmatprep.subr.mxu0 0.0
    %387 = vmatpush1.msra.mxu0 0.0
    %388 = vmatprep.subr.mxu0 0.0
    %389 = vmatpush1.msra.mxu0 0.0
    %390 = vmatprep.subr.mxu0 0.0
    %391 = vmatpush1.msra.mxu0 0.0
    %392 = vmatprep.subr.mxu0 0.0
    %393 = vmatpush1.msra.mxu0 0.0
    %394 = vmatprep.subr.mxu0 0.0
    %395 = vmatpush1.msra.mxu0 0.0
    %396 = vmatprep.mubr.f32.mxu0 0.0
    %397 = vmatmul.mubr.f32.gmra.mrb[0].mxu0 %v331
    %v398 = vpop.f32.mrb[0].mxu0
    %v399 = vadd.f32 0.0, %v398
    %v400 = vpop.f32.mrb[0].mxu0
    %401 = vdwg.mxu0
    %v402 = vrcp.pop %v399
    %v403 = vmul.f32 %v331, %v402
    %v404 = vld [vmem:[%s3] sm:$0x1]
    %v406 = vlaneseq
    %v407 = vshrl.u32 %v406, 7
    %v408 = vsub.s32 0, %v407
    %v409 = vrot.slane %v404, %v408
    %v411 = vmul.f32 %v403, %v409
    %412 = vmatprep.subr.mxu0 0.0
    %413 = vmatpush1.msra.mxu0 %v97
    %414 = vmatprep.subr.mxu0 0.0
    %415 = vmatpush1.msra.mxu0 %v98
    %416 = vmatprep.subr.mxu0 0.0
    %417 = vmatpush1.msra.mxu0 %v99
    %418 = vmatprep.subr.mxu0 0.0
    %419 = vmatpush1.msra.mxu0 %v100
    %420 = vmatprep.subr.mxu0 0.0
    %421 = vmatpush1.msra.mxu0 %v101
    %422 = vmatprep.subr.mxu0 0.0
    %423 = vmatpush1.msra.mxu0 %v102
    %424 = vmatprep.subr.mxu0 0.0
    %425 = vmatpush1.msra.mxu0 %v103
    %426 = vmatprep.subr.mxu0 0.0
    %427 = vmatpush1.msra.mxu0 %v104
    %428 = vmatprep.subr.mxu0 0.0
    %429 = vmatpush1.msra.mxu0 %v105
    %430 = vmatprep.subr.mxu0 0.0
    %431 = vmatpush1.msra.mxu0 %v106
    %432 = vmatprep.subr.mxu0 0.0
    %433 = vmatpush1.msra.mxu0 %v107
    %434 = vmatprep.subr.mxu0 0.0
    %435 = vmatpush1.msra.mxu0 %v108
    %436 = vmatprep.subr.mxu0 0.0
    %437 = vmatpush1.msra.mxu0 %v109
    %438 = vmatprep.subr.mxu0 0.0
    %439 = vmatpush1.msra.mxu0 %v110
    %440 = vmatprep.subr.mxu0 0.0
    %441 = vmatpush1.msra.mxu0 %v111
    %442 = vmatprep.subr.mxu0 0.0
    %443 = vmatpush1.msra.mxu0 %v112
    %444 = vmatprep.subr.mxu0 0.0
    %445 = vmatpush1.msra.mxu0 0.0
    %446 = vmatprep.subr.mxu0 0.0
    %447 = vmatpush1.msra.mxu0 0.0
    %448 = vmatprep.subr.mxu0 0.0
    %449 = vmatpush1.msra.mxu0 0.0
    %450 = vmatprep.subr.mxu0 0.0
    %451 = vmatpush1.msra.mxu0 0.0
    %452 = vmatprep.subr.mxu0 0.0
    %453 = vmatpush1.msra.mxu0 0.0
    %454 = vmatprep.subr.mxu0 0.0
    %455 = vmatpush1.msra.mxu0 0.0
    %456 = vmatprep.subr.mxu0 0.0
    %457 = vmatpush1.msra.mxu0 0.0
    %458 = vmatprep.subr.mxu0 0.0
    %459 = vmatpush1.msra.mxu0 0.0
    %460 = vmatprep.subr.mxu0 0.0
    %461 = vmatpush1.msra.mxu0 0.0
    %462 = vmatprep.subr.mxu0 0.0
    %463 = vmatpush1.msra.mxu0 0.0
    %464 = vmatprep.subr.mxu0 0.0
    %465 = vmatpush1.msra.mxu0 0.0
    %466 = vmatprep.subr.mxu0 0.0
    %467 = vmatpush1.msra.mxu0 0.0
    %468 = vmatprep.subr.mxu0 0.0
    %469 = vmatpush1.msra.mxu0 0.0
    %470 = vmatprep.subr.mxu0 0.0
    %471 = vmatpush1.msra.mxu0 0.0
    %472 = vmatprep.subr.mxu0 0.0
    %473 = vmatpush1.msra.mxu0 0.0
    %474 = vmatprep.subr.mxu0 0.0
    %475 = vmatpush1.msra.mxu0 0.0
    %476 = vmatprep.mubr.f32.mxu0 0.0
    %477 = vmatmul.mubr.f32.gmra.mrb[0].mxu0 %v411
    %v478 = vpop.f32.mrb[0].mxu0
    %v479 = vadd.f32 0.0, %v478
    %v480 = vpop.f32.mrb[0].mxu0
    %481 = vdwg.mxu0
    %v482 = vld [vmem:[%s4] sm:$0x1]
    %v484 = vlaneseq
    %v485 = vshrl.u32 %v484, 7
    %v486 = vsub.s32 0, %v485
    %v487 = vrot.slane %v482, %v486
    %v489 = vmul.f32 %v403, %v487
    %490 = vmatprep.subr.mxu0 0.0
    %491 = vmatpush1.msra.mxu0 %v97
    %492 = vmatprep.subr.mxu0 0.0
    %493 = vmatpush1.msra.mxu0 %v98
    %494 = vmatprep.subr.mxu0 0.0
    %495 = vmatpush1.msra.mxu0 %v99
    %496 = vmatprep.subr.mxu0 0.0
    %497 = vmatpush1.msra.mxu0 %v100
    %498 = vmatprep.subr.mxu0 0.0
    %499 = vmatpush1.msra.mxu0 %v101
    %500 = vmatprep.subr.mxu0 0.0
    %501 = vmatpush1.msra.mxu0 %v102
    %502 = vmatprep.subr.mxu0 0.0
    %503 = vmatpush1.msra.mxu0 %v103
    %504 = vmatprep.subr.mxu0 0.0
    %505 = vmatpush1.msra.mxu0 %v104
    %506 = vmatprep.subr.mxu0 0.0
    %507 = vmatpush1.msra.mxu0 %v105
    %508 = vmatprep.subr.mxu0 0.0
    %509 = vmatpush1.msra.mxu0 %v106
    %510 = vmatprep.subr.mxu0 0.0
    %511 = vmatpush1.msra.mxu0 %v107
    %512 = vmatprep.subr.mxu0 0.0
    %513 = vmatpush1.msra.mxu0 %v108
    %514 = vmatprep.subr.mxu0 0.0
    %515 = vmatpush1.msra.mxu0 %v109
    %516 = vmatprep.subr.mxu0 0.0
    %517 = vmatpush1.msra.mxu0 %v110
    %518 = vmatprep.subr.mxu0 0.0
    %519 = vmatpush1.msra.mxu0 %v111
    %520 = vmatprep.subr.mxu0 0.0
    %521 = vmatpush1.msra.mxu0 %v112
    %522 = vmatprep.subr.mxu0 0.0
    %523 = vmatpush1.msra.mxu0 0.0
    %524 = vmatprep.subr.mxu0 0.0
    %525 = vmatpush1.msra.mxu0 0.0
    %526 = vmatprep.subr.mxu0 0.0
    %527 = vmatpush1.msra.mxu0 0.0
    %528 = vmatprep.subr.mxu0 0.0
    %529 = vmatpush1.msra.mxu0 0.0
    %530 = vmatprep.subr.mxu0 0.0
    %531 = vmatpush1.msra.mxu0 0.0
    %532 = vmatprep.subr.mxu0 0.0
    %533 = vmatpush1.msra.mxu0 0.0
    %534 = vmatprep.subr.mxu0 0.0
    %535 = vmatpush1.msra.mxu0 0.0
    %536 = vmatprep.subr.mxu0 0.0
    %537 = vmatpush1.msra.mxu0 0.0
    %538 = vmatprep.subr.mxu0 0.0
    %539 = vmatpush1.msra.mxu0 0.0
    %540 = vmatprep.subr.mxu0 0.0
    %541 = vmatpush1.msra.mxu0 0.0
    %542 = vmatprep.subr.mxu0 0.0
    %543 = vmatpush1.msra.mxu0 0.0
    %544 = vmatprep.subr.mxu0 0.0
    %545 = vmatpush1.msra.mxu0 0.0
    %546 = vmatprep.subr.mxu0 0.0
    %547 = vmatpush1.msra.mxu0 0.0
    %548 = vmatprep.subr.mxu0 0.0
    %549 = vmatpush1.msra.mxu0 0.0
    %550 = vmatprep.subr.mxu0 0.0
    %551 = vmatpush1.msra.mxu0 0.0
    %552 = vmatprep.subr.mxu0 0.0
    %553 = vmatpush1.msra.mxu0 0.0
    %554 = vmatprep.mubr.f32.mxu0 0.0
    %555 = vmatmul.mubr.f32.gmra.mrb[0].mxu0 %v489
    %v556 = vpop.f32.mrb[0].mxu0
    %v557 = vadd.f32 0.0, %v556
    %v558 = vpop.f32.mrb[0].mxu0
    %559 = vdwg.mxu0
    %v560 = vmul.f32 %v479, %v479
    %v561 = vmul.f32 %v557, %v557
    %v562 = vadd.f32 %v560, %v561
    %v563 = vmax.f32 %v562, 1e-20
    %v564 = vrsqrt.pop %v563
    %v565 = vmul.f32 %v479, %v564
    %v566 = vmul.f32 %v557, %v564
    %v567 = vmul.f32 %v565, 8.24415
    %v568 = vmul.f32 %v566, 3.0006254
    %v569 = vadd.f32 %v567, %v568
    %v570 = vmul.f32 %v566, 8.24415
    %v571 = vmul.f32 %v565, 3.0006254
    %v572 = vsub.f32 %v570, %v571
    %573 = vadd.xlane.f32.xlu0 %v569
    %v574 = vpop.xlane.xlu0 %573
    %v575 = vmul.f32 %v574, 0.0015432099
    %576 = vadd.xlane.f32.xlu0 %v572
    %v577 = vpop.xlane.xlu0 %576
    %v578 = vmul.f32 %v577, 0.0015432099
    %vm579 = vcmp.eq.s32.totalorder %v191, 72
    %v580 = vsel %vm579, %v575, %v329
    %vm581 = vcmp.eq.s32.totalorder %v191, 73
    %v582 = vsel %vm581, %v578, %v580
    %583 = vst [vmem:[#allocation8] sm:$0xff] %v582
    // Predicated region
    $region38: #{tpu_custom_call.1} parent=1 // pred_check
      _
    $region39: #{tpu_custom_call.1} parent=1 // pred_check_branch
      %585 = sbr.rel (0) target = $region41
    $region40: #{tpu_custom_call.1} parent=1 // pred_region
      %s587 = ssub.s32 128, 128
      %588 = vsyncadd [#allocation4], %s587
      %s590 = sshll.u32 [#allocation8], 4
      %s591 = int_to_ptr.vmem [resolvable:$true] %s590
      %593 = dma.vmem_to_hbm [thread:$0]  %s591, 128, %s6, [#allocation4]
    $region41: #{tpu_custom_call.1} parent=1 // pred_fallthru
      _
    // Predicated region
    $region42: #{tpu_custom_call.1} parent=1 // pred_check
      _
    $region43: #{tpu_custom_call.1} parent=1 // pred_check_branch
      %595 = sbr.rel (0) target = $region45
    $region44: #{tpu_custom_call.1} parent=1 // pred_region
      %596 = dma.done [#allocation4], 128
    $region45: #{tpu_custom_call.1} parent=1 // pred_fallthru
      _
    %597 = vsyncpa [#allocation3], 1
    %598 = vsyncpa [#allocation6], 1
    %599 = vsyncpa [#allocation4], 1

</llo_original>
